<compile_context>
chip_gen: v5e
topology: v5e:2x2
jax: 0.10.0
libtpu: 0.0.40
codegen_flags: <defaults>
</compile_context>

<pallas_src>
import functools

import jax
import jax.numpy as jnp
from jax.experimental import pallas as pl
from jax.experimental.pallas import tpu as pltpu


def _round_up(x, m):
    return (x + m - 1) // m * m


def _bn_scale_shift(gamma, beta, mean, var, eps=1e-5):
    scale = gamma * jax.lax.rsqrt(var + eps)
    shift = beta - mean * scale
    return scale, shift


# --------------------------- Pallas kernels ---------------------------------

def _matmul_bias_kernel(x_ref, w_ref, b_ref, o_ref, *, relu):
    # bf16 operands, f32 MXU accumulation, f32 epilogue (bias + ReLU).
    acc = jnp.dot(x_ref[...], w_ref[...], preferred_element_type=jnp.float32)
    acc = acc + b_ref[...]                      # (tm, Np) + (1, Np)
    if relu:
        acc = jnp.maximum(acc, 0.0)
    o_ref[...] = acc.astype(o_ref.dtype)


def matmul_bias(x, w, b, relu=False):
    """Fused y = relu?(x @ w + b).  x:(M,K) w:(K,N) b:(N,) -> (M,N) f32.

    N is zero-padded to a multiple of 128 (lane-dense unmasked stores), K to a
    multiple of 16 (bf16 sublane pack), M to a multiple of 8; the result is
    sliced back.  Operands are cast to bf16 before padding (less pad traffic).
    """
    M, K = x.shape
    K2, N = w.shape
    assert K == K2
    Kp = _round_up(K, 16)
    Np = _round_up(N, 128)
    Mp = _round_up(M, 8)

    xp = x.astype(jnp.bfloat16)
    wp = w.astype(jnp.bfloat16)
    bp = b.astype(jnp.float32)
    if Kp != K:
        xp = jnp.pad(xp, ((0, 0), (0, Kp - K)))
        wp = jnp.pad(wp, ((0, Kp - K), (0, 0)))
    if Np != N:
        wp = jnp.pad(wp, ((0, 0), (0, Np - N)))
        bp = jnp.pad(bp, ((0, Np - N),))
    if Mp != M:
        xp = jnp.pad(xp, ((0, Mp - M), (0, 0)))

    # M-tile: prefer 256/128 so the grid exceeds 1 (feeds both v7x TCs),
    # else take the full (small) extent in a single step.
    tm = Mp
    for cand in (256, 128):
        if Mp % cand == 0:
            tm = cand
            break

    # TODO(synk): for real ResNet-50 weight sizes add a trailing "arbitrary"
    #             K grid axis with a VMEM f32 accumulator (+ vmem_limit_bytes
    #             for v7x's 64 MiB VMEM) instead of one full (K,N) block.
    out = pl.pallas_call(
        functools.partial(_matmul_bias_kernel, relu=relu),
        out_shape=jax.ShapeDtypeStruct((Mp, Np), jnp.float32),
        grid_spec=pltpu.PrefetchScalarGridSpec(
            num_scalar_prefetch=0,
            grid=(Mp // tm,),
            in_specs=[
                pl.BlockSpec((tm, Kp), lambda i: (i, 0)),
                pl.BlockSpec((Kp, Np), lambda i: (0, 0)),
                pl.BlockSpec((1, Np), lambda i: (0, 0)),
            ],
            out_specs=pl.BlockSpec((tm, Np), lambda i: (i, 0)),
        ),
        compiler_params=pltpu.CompilerParams(
            dimension_semantics=("parallel",)),
    )(xp, wp, bp.reshape(1, Np))

    if Mp != M or Np != N:
        out = out[:M, :N]
    return out


def _conv_pool_head_kernel(x_ref, wc_ref, bc_ref, w1_ref, b1_ref,
                           w2_ref, b2_ref, o_ref, *, c2, inv_hw):
    # Fused: conv2 (as im2col matmul, BN folded) + ReLU -> AdaptiveConcatPool2d
    # -> (BN->)Linear -> ReLU -> (BN->)Linear(->BN_final).  BNs are pre-folded.
    x = x_ref[...]                                           # (B, HW, K) bf16
    f = jnp.einsum('bhk,kc->bhc', x, wc_ref[...],
                   preferred_element_type=jnp.float32)       # (B, HW, C2) f32
    f = jnp.maximum(f + bc_ref[...], 0.0)                    # conv2 bias + ReLU
    mx = jnp.max(f, axis=1)                                  # global max pool (B,C2)
    av = jnp.sum(f, axis=1) * inv_hw                         # global avg pool (B,C2)
    # Concat([max, avg]) @ W1 == max @ W1[:C2] + avg @ W1[C2:]  (no lane concat)
    w1 = w1_ref[...]
    h = (jnp.dot(mx, w1[:c2], preferred_element_type=jnp.float32)
         + jnp.dot(av, w1[c2:], preferred_element_type=jnp.float32)
         + b1_ref[...])
    h = jnp.maximum(h, 0.0)
    out = jnp.dot(h, w2_ref[...], preferred_element_type=jnp.float32) + b2_ref[...]
    o_ref[...] = out.astype(o_ref.dtype)


def fused_conv_pool_head(patches, wc, bc, w1, b1, w2, b2):
    """patches:(B,HW,K); wc:(K,C2); w1:(2*C2,N1); w2:(N1,N2) -> (B,N2) f32."""
    B, HW, K = patches.shape
    C2 = wc.shape[1]
    N1 = w1.shape[1]
    N2 = w2.shape[1]
    Kp = _round_up(K, 16)                      # bf16 sublane pack

    pp = patches.astype(jnp.bfloat16)
    wcp = wc.astype(jnp.bfloat16)
    if Kp != K:
        pp = jnp.pad(pp, ((0, 0), (0, 0), (0, Kp - K)))
        wcp = jnp.pad(wcp, ((0, Kp - K), (0, 0)))

    return pl.pallas_call(
        functools.partial(_conv_pool_head_kernel, c2=C2, inv_hw=1.0 / HW),
        out_shape=jax.ShapeDtypeStruct((B, N2), jnp.float32),
        grid_spec=pltpu.PrefetchScalarGridSpec(
            num_scalar_prefetch=0,
            grid=(1,),
            in_specs=[
                pl.BlockSpec((B, HW, Kp), lambda i: (0, 0, 0)),
                pl.BlockSpec((Kp, C2), lambda i: (0, 0)),
                pl.BlockSpec((1, C2), lambda i: (0, 0)),
                pl.BlockSpec((2 * C2, N1), lambda i: (0, 0)),
                pl.BlockSpec((1, N1), lambda i: (0, 0)),
                pl.BlockSpec((N1, N2), lambda i: (0, 0)),
                pl.BlockSpec((1, N2), lambda i: (0, 0)),
            ],
            out_specs=pl.BlockSpec((B, N2), lambda i: (0, 0)),
        ),
    )(pp, wcp,
      bc.reshape(1, C2).astype(jnp.float32),
      w1.astype(jnp.float32), b1.reshape(1, N1).astype(jnp.float32),
      w2.astype(jnp.float32), b2.reshape(1, N2).astype(jnp.float32))


# --------------------------- glue (im2col, BN folds) -------------------------

def _im2col(x, kh, kw, stride, pad):
    """x:(B,H,W,Cin) NHWC -> patches:(B, Ho*Wo, kh*kw*Cin)."""
    B, H, W, Cin = x.shape
    xp = jnp.pad(x, ((0, 0), (pad, pad), (pad, pad), (0, 0)))
    Ho = (H + 2 * pad - kh) // stride + 1
    Wo = (W + 2 * pad - kw) // stride + 1
    # TODO(synk): im2col stays in XLA glue; a resident-tile Pallas conv
    #             (9 shifted accumulating matmuls) would remove the 9x
    #             activation inflation for a full ResNet-50 body.
    cols = []
    for i in range(kh):
        for j in range(kw):
            cols.append(xp[:, i:i + stride * Ho:stride,
                           j:j + stride * Wo:stride, :])
    patches = jnp.stack(cols, axis=3).reshape(B, Ho * Wo, kh * kw * Cin)
    return patches, Ho, Wo


def get_embedding(x_nchw, p):
    """x_nchw:(N,C,H,W) -> (N,128) embedding (shared-weight CNN)."""
    x = jnp.transpose(x_nchw, (0, 2, 3, 1)).astype(jnp.float32)   # NCHW -> NHWC

    # --- body: conv1 + BN + ReLU (Pallas matmul kernel on im2col patches) ---
    pat1, Ho1, Wo1 = _im2col(x, 3, 3, 2, 1)
    B3, HW1, K1 = pat1.shape
    s1, sh1 = _bn_scale_shift(p['conv1_g'], p['conv1_b'],
                              p['conv1_m'], p['conv1_v'])
    y1 = matmul_bias(pat1.reshape(B3 * HW1, K1),
                     p['conv1_w'] * s1[None, :], sh1, relu=True)
    y1 = y1.reshape(B3, Ho1, Wo1, -1)

    # --- conv2 + BN + ReLU + AdaptiveConcatPool2d + head: one fused kernel ---
    pat2, _, _ = _im2col(y1, 3, 3, 2, 1)
    s2, sh2 = _bn_scale_shift(p['conv2_g'], p['conv2_b'],
                              p['conv2_m'], p['conv2_v'])
    wc = p['conv2_w'] * s2[None, :]
    bc = sh2

    # fold the head BNs (eval-mode running stats, full mean/var/eps) into the
    # two Linears: BN1d(2C)->Lin(2C,256)->ReLU->BN1d(256)->Lin(256,128)->BN1d(128)
    sb1, shb1 = _bn_scale_shift(p['bn1_g'], p['bn1_b'], p['bn1_m'], p['bn1_v'])
    w1f = sb1[:, None] * p['lin1_w']
    b1f = shb1 @ p['lin1_w'] + p['lin1_b']
    sb2, shb2 = _bn_scale_shift(p['bn2_g'], p['bn2_b'], p['bn2_m'], p['bn2_v'])
    w2f = sb2[:, None] * p['lin2_w']
    b2f = shb2 @ p['lin2_w'] + p['lin2_b']
    sf, shf = _bn_scale_shift(p['bnf_g'], p['bnf_b'], p['bnf_m'], p['bnf_v'])
    w2ff = w2f * sf[None, :]
    b2ff = b2f * sf + shf

    return fused_conv_pool_head(pat2, wc, bc, w1f, b1f, w2ff, b2ff)


def trivide(triplet):
    n = triplet.shape[-1] // 3
    return triplet[..., :n], triplet[..., n:2 * n], triplet[..., 2 * n:3 * n]


def triple_net_forward(triplet, params):
    fake0, fake1, original = trivide(triplet)
    B = fake0.shape[0]
    # Shared weights: run the whole triplet as one (3B, C, H, W) batch.
    batched = jnp.concatenate([fake0, fake1, original], axis=0)
    emb = get_embedding(batched, params)                           # (3B, 128)
    return emb[:B], emb[B:2 * B], emb[2 * B:3 * B]


# --------------------------- deterministic params ----------------------------

def init_params(key, c_in=3, c1=16, c2=32, lin_ftrs=256, emb_sz=128):
    ks = jax.random.split(key, 12)
    nrm = lambda k, s, sc: sc * jax.random.normal(k, s, jnp.float32)
    zeros = lambda n: jnp.zeros((n,), jnp.float32)
    ones = lambda n: jnp.ones((n,), jnp.float32)
    nf = 2 * c2   # AdaptiveConcatPool2d doubles the feature count
    return dict(
        conv1_w=nrm(ks[0], (3 * 3 * c_in, c1), 0.10),
        conv1_g=ones(c1), conv1_b=zeros(c1), conv1_m=zeros(c1), conv1_v=ones(c1),
        conv2_w=nrm(ks[1], (3 * 3 * c1, c2), 0.05),
        conv2_g=ones(c2), conv2_b=zeros(c2), conv2_m=zeros(c2), conv2_v=ones(c2),
        bn1_g=1.0 + nrm(ks[2], (nf,), 0.01), bn1_b=nrm(ks[3], (nf,), 0.01),
        bn1_m=zeros(nf), bn1_v=ones(nf),
        lin1_w=nrm(ks[4], (nf, lin_ftrs), 0.05),
        lin1_b=nrm(ks[5], (lin_ftrs,), 0.01),
        bn2_g=1.0 + nrm(ks[6], (lin_ftrs,), 0.01),
        bn2_b=nrm(ks[7], (lin_ftrs,), 0.01),
        bn2_m=zeros(lin_ftrs), bn2_v=ones(lin_ftrs),
        lin2_w=nrm(ks[8], (lin_ftrs, emb_sz), 0.05),
        lin2_b=nrm(ks[9], (emb_sz,), 0.01),
        bnf_g=1.0 + nrm(ks[10], (emb_sz,), 0.01),
        bnf_b=nrm(ks[11], (emb_sz,), 0.01),
        bnf_m=zeros(emb_sz), bnf_v=ones(emb_sz),
    )


# --------------------------------- main --------------------------------------

if __name__ == "__main__":
    key = jax.random.PRNGKey(0)
    kx, kp = jax.random.split(key)
    B, C, H, W = 2, 3, 16, 16
    # PyTorch-style NCHW triplet: width holds [fake0 | fake1 | original]
    triplet = jax.random.normal(kx, (B, C, H, 3 * W), jnp.float32)
    params = init_params(kp)

    fwd = jax.jit(triple_net_forward)
    a, p, n = fwd(triplet, params)
    jax.block_until_ready((a, p, n))
    assert a.shape == (B, 128) and p.shape == (B, 128) and n.shape == (B, 128)
    assert a.dtype == jnp.float32
    print("KERNEL_OK")
</pallas_src>

<mosaic_0001>
module attributes {stable_mosaic.version = 11 : i64} {
  func.func @_matmul_bias_kernel(%arg0: i32, %arg1: memref<128x32xbf16, #tpu.memory_space<vmem>>, %arg2: memref<32x128xbf16, #tpu.memory_space<vmem>>, %arg3: memref<1x128xf32, #tpu.memory_space<vmem>>, %arg4: memref<128x128xf32, #tpu.memory_space<vmem>>) attributes {dimension_semantics = [#tpu.dimension_semantics<parallel>], iteration_bounds = array<i64: 3>, scalar_prefetch = 0 : i64, scratch_operands = 0 : i64, tpu.core_type = #tpu.core_type<tc>, window_params = [{transform_indices = @transform_0, window_bounds = array<i64: 128, 32>}, {pipeline_mode = #tpu.pipeline_mode<synchronous>, transform_indices = @transform_1, window_bounds = array<i64: 32, 128>}, {pipeline_mode = #tpu.pipeline_mode<synchronous>, transform_indices = @transform_2, window_bounds = array<i64: 1, 128>}, {transform_indices = @transform_3, window_bounds = array<i64: 128, 128>}]} {
    %c0 = arith.constant 0 : index
    %c0_0 = arith.constant 0 : index
    %0 = vector.load %arg1[%c0, %c0_0] : memref<128x32xbf16, #tpu.memory_space<vmem>>, vector<128x32xbf16>
    %c0_1 = arith.constant 0 : index
    %c0_2 = arith.constant 0 : index
    %1 = vector.load %arg2[%c0_1, %c0_2] : memref<32x128xbf16, #tpu.memory_space<vmem>>, vector<32x128xbf16>
    %cst = arith.constant dense<0.000000e+00> : vector<128x128xf32>
    %2 = tpu.matmul %0, %1, %cst {dimension_numbers = #tpu.dot_dimension_numbers<[1], [0], [0], [1], [0, 0, 1, 1], [], []>} : vector<128x32xbf16>, vector<32x128xbf16>, vector<128x128xf32> -> vector<128x128xf32>
    %c0_3 = arith.constant 0 : index
    %c0_4 = arith.constant 0 : index
    %3 = vector.load %arg3[%c0_3, %c0_4] : memref<1x128xf32, #tpu.memory_space<vmem>>, vector<1x128xf32>
    %4 = vector.broadcast %3 : vector<1x128xf32> to vector<128x128xf32>
    %5 = arith.addf %2, %4 : vector<128x128xf32>
    %cst_5 = arith.constant 0.000000e+00 : f32
    %6 = vector.broadcast %cst_5 : f32 to vector<128x128xf32>
    %7 = arith.maximumf %5, %6 : vector<128x128xf32>
    %c0_6 = arith.constant 0 : index
    %c0_7 = arith.constant 0 : index
    %8 = vector.load %arg4[%c0_6, %c0_7] : memref<128x128xf32, #tpu.memory_space<vmem>>, vector<128x128xf32>
    tpu.vector_store %arg4[%c0_6, %c0_7], %7 {strides = array<i32>} : memref<128x128xf32, #tpu.memory_space<vmem>>, vector<128x128xf32>,
    return
  }
  func.func @transform_0(%arg0: i32) -> (i32, i32) {
    %c0_i32 = arith.constant 0 : i32
    %c0_i32_0 = arith.constant 0 : i32
    return %arg0, %c0_i32 : i32, i32
  }
  func.func @transform_1(%arg0: i32) -> (i32, i32) {
    %c0_i32 = arith.constant 0 : i32
    %c0_i32_0 = arith.constant 0 : i32
    %c0_i32_1 = arith.constant 0 : i32
    return %c0_i32, %c0_i32_0 : i32, i32
  }
  func.func @transform_2(%arg0: i32) -> (i32, i32) {
    %c0_i32 = arith.constant 0 : i32
    %c0_i32_0 = arith.constant 0 : i32
    %c0_i32_1 = arith.constant 0 : i32
    return %c0_i32, %c0_i32_0 : i32, i32
  }
  func.func @transform_3(%arg0: i32) -> (i32, i32) {
    %c0_i32 = arith.constant 0 : i32
    %c0_i32_0 = arith.constant 0 : i32
    return %arg0, %c0_i32 : i32, i32
  }
}

module attributes {stable_mosaic.version = 11 : i64} {
  func.func @_conv_pool_head_kernel(%arg0: i32, %arg1: memref<6x16x144xbf16, #tpu.memory_space<vmem>>, %arg2: memref<144x32xbf16, #tpu.memory_space<vmem>>, %arg3: memref<1x32xf32, #tpu.memory_space<vmem>>, %arg4: memref<64x256xf32, #tpu.memory_space<vmem>>, %arg5: memref<1x256xf32, #tpu.memory_space<vmem>>, %arg6: memref<256x128xf32, #tpu.memory_space<vmem>>, %arg7: memref<1x128xf32, #tpu.memory_space<vmem>>, %arg8: memref<6x128xf32, #tpu.memory_space<vmem>>) attributes {dimension_semantics = [#tpu.dimension_semantics<arbitrary>], iteration_bounds = array<i64: 1>, scalar_prefetch = 0 : i64, scratch_operands = 0 : i64, tpu.core_type = #tpu.core_type<tc>, window_params = [{pipeline_mode = #tpu.pipeline_mode<synchronous>, transform_indices = @transform_0, window_bounds = array<i64: 6, 16, 144>}, {pipeline_mode = #tpu.pipeline_mode<synchronous>, transform_indices = @transform_1, window_bounds = array<i64: 144, 32>}, {pipeline_mode = #tpu.pipeline_mode<synchronous>, transform_indices = @transform_2, window_bounds = array<i64: 1, 32>}, {pipeline_mode = #tpu.pipeline_mode<synchronous>, transform_indices = @transform_3, window_bounds = array<i64: 64, 256>}, {pipeline_mode = #tpu.pipeline_mode<synchronous>, transform_indices = @transform_4, window_bounds = array<i64: 1, 256>}, {pipeline_mode = #tpu.pipeline_mode<synchronous>, transform_indices = @transform_5, window_bounds = array<i64: 256, 128>}, {pipeline_mode = #tpu.pipeline_mode<synchronous>, transform_indices = @transform_6, window_bounds = array<i64: 1, 128>}, {pipeline_mode = #tpu.pipeline_mode<synchronous>, transform_indices = @transform_7, window_bounds = array<i64: 6, 128>}]} {
    %c0 = arith.constant 0 : index
    %c0_0 = arith.constant 0 : index
    %c0_1 = arith.constant 0 : index
    %0 = vector.load %arg1[%c0, %c0_0, %c0_1] : memref<6x16x144xbf16, #tpu.memory_space<vmem>>, vector<6x16x144xbf16>
    %c0_2 = arith.constant 0 : index
    %c0_3 = arith.constant 0 : index
    %1 = vector.load %arg2[%c0_2, %c0_3] : memref<144x32xbf16, #tpu.memory_space<vmem>>, vector<144x32xbf16>
    "tpu.trace_start"() <{level = 10 : i32, message = "bhk,kc->bhc"}> : () -> ()
    %cst = arith.constant dense<0.000000e+00> : vector<6x16x32xf32>
    %2 = tpu.matmul %0, %1, %cst {dimension_numbers = #tpu.dot_dimension_numbers<[2], [0], [0, 1], [1], [0, 0, 0, 1, 1, 1], [], []>} : vector<6x16x144xbf16>, vector<144x32xbf16>, vector<6x16x32xf32> -> vector<6x16x32xf32>
    "tpu.trace_stop"() : () -> ()
    %c0_4 = arith.constant 0 : index
    %c0_5 = arith.constant 0 : index
    %3 = vector.load %arg3[%c0_4, %c0_5] : memref<1x32xf32, #tpu.memory_space<vmem>>, vector<1x32xf32>
    %4 = vector.shape_cast %3 : vector<1x32xf32> to vector<1x1x32xf32>
    %5 = vector.broadcast %4 : vector<1x1x32xf32> to vector<6x16x32xf32>
    %6 = arith.addf %2, %5 : vector<6x16x32xf32>
    %cst_6 = arith.constant 0.000000e+00 : f32
    %7 = vector.broadcast %cst_6 : f32 to vector<6x16x32xf32>
    %8 = arith.maximumf %6, %7 : vector<6x16x32xf32>
    %cst_7 = arith.constant dense<0xFF800000> : vector<6x32xf32>
    %9 = vector.multi_reduction <maximumf>, %8, %cst_7 [1] : vector<6x16x32xf32> to vector<6x32xf32>
    %cst_8 = arith.constant dense<0.000000e+00> : vector<6x32xf32>
    %10 = vector.multi_reduction <add>, %8, %cst_8 [1] : vector<6x16x32xf32> to vector<6x32xf32>
    %cst_9 = arith.constant 6.250000e-02 : f32
    %11 = vector.broadcast %cst_9 : f32 to vector<6x32xf32>
    %12 = arith.mulf %10, %11 : vector<6x32xf32>
    %c0_10 = arith.constant 0 : index
    %c0_11 = arith.constant 0 : index
    %13 = vector.load %arg4[%c0_10, %c0_11] : memref<64x256xf32, #tpu.memory_space<vmem>>, vector<64x256xf32>
    %14 = vector.extract_strided_slice %13 {offsets = [0, 0], sizes = [32, 256], strides = [1, 1]} : vector<64x256xf32> to vector<32x256xf32>
    %cst_12 = arith.constant dense<0.000000e+00> : vector<6x256xf32>
    %15 = tpu.matmul %9, %14, %cst_12 {dimension_numbers = #tpu.dot_dimension_numbers<[1], [0], [0], [1], [0, 0, 1, 1], [], []>} : vector<6x32xf32>, vector<32x256xf32>, vector<6x256xf32> -> vector<6x256xf32>
    %16 = vector.extract_strided_slice %13 {offsets = [32, 0], sizes = [32, 256], strides = [1, 1]} : vector<64x256xf32> to vector<32x256xf32>
    %cst_13 = arith.constant dense<0.000000e+00> : vector<6x256xf32>
    %17 = tpu.matmul %12, %16, %cst_13 {dimension_numbers = #tpu.dot_dimension_numbers<[1], [0], [0], [1], [0, 0, 1, 1], [], []>} : vector<6x32xf32>, vector<32x256xf32>, vector<6x256xf32> -> vector<6x256xf32>
    %18 = arith.addf %15, %17 : vector<6x256xf32>
    %c0_14 = arith.constant 0 : index
    %c0_15 = arith.constant 0 : index
    %19 = vector.load %arg5[%c0_14, %c0_15] : memref<1x256xf32, #tpu.memory_space<vmem>>, vector<1x256xf32>
    %20 = vector.broadcast %19 : vector<1x256xf32> to vector<6x256xf32>
    %21 = arith.addf %18, %20 : vector<6x256xf32>
    %cst_16 = arith.constant 0.000000e+00 : f32
    %22 = vector.broadcast %cst_16 : f32 to vector<6x256xf32>
    %23 = arith.maximumf %21, %22 : vector<6x256xf32>
    %c0_17 = arith.constant 0 : index
    %c0_18 = arith.constant 0 : index
    %24 = vector.load %arg6[%c0_17, %c0_18] : memref<256x128xf32, #tpu.memory_space<vmem>>, vector<256x128xf32>
    %cst_19 = arith.constant dense<0.000000e+00> : vector<6x128xf32>
    %25 = tpu.matmul %23, %24, %cst_19 {dimension_numbers = #tpu.dot_dimension_numbers<[1], [0], [0], [1], [0, 0, 1, 1], [], []>} : vector<6x256xf32>, vector<256x128xf32>, vector<6x128xf32> -> vector<6x128xf32>
    %c0_20 = arith.constant 0 : index
    %c0_21 = arith.constant 0 : index
    %26 = vector.load %arg7[%c0_20, %c0_21] : memref<1x128xf32, #tpu.memory_space<vmem>>, vector<1x128xf32>
    %27 = vector.broadcast %26 : vector<1x128xf32> to vector<6x128xf32>
    %28 = arith.addf %25, %27 : vector<6x128xf32>
    %c0_22 = arith.constant 0 : index
    %c0_23 = arith.constant 0 : index
    %29 = vector.load %arg8[%c0_22, %c0_23] : memref<6x128xf32, #tpu.memory_space<vmem>>, vector<6x128xf32>
    tpu.vector_store %arg8[%c0_22, %c0_23], %28 {strides = array<i32>} : memref<6x128xf32, #tpu.memory_space<vmem>>, vector<6x128xf32>,
    return
  }
  func.func @transform_0(%arg0: i32) -> (i32, i32, i32) {
    %c0_i32 = arith.constant 0 : i32
    %c0_i32_0 = arith.constant 0 : i32
    %c0_i32_1 = arith.constant 0 : i32
    %c0_i32_2 = arith.constant 0 : i32
    return %c0_i32, %c0_i32_0, %c0_i32_1 : i32, i32, i32
  }
  func.func @transform_1(%arg0: i32) -> (i32, i32) {
    %c0_i32 = arith.constant 0 : i32
    %c0_i32_0 = arith.constant 0 : i32
    %c0_i32_1 = arith.constant 0 : i32
    return %c0_i32, %c0_i32_0 : i32, i32
  }
  func.func @transform_2(%arg0: i32) -> (i32, i32) {
    %c0_i32 = arith.constant 0 : i32
    %c0_i32_0 = arith.constant 0 : i32
    %c0_i32_1 = arith.constant 0 : i32
    return %c0_i32, %c0_i32_0 : i32, i32
  }
  func.func @transform_3(%arg0: i32) -> (i32, i32) {
    %c0_i32 = arith.constant 0 : i32
    %c0_i32_0 = arith.constant 0 : i32
    %c0_i32_1 = arith.constant 0 : i32
    return %c0_i32, %c0_i32_0 : i32, i32
  }
  func.func @transform_4(%arg0: i32) -> (i32, i32) {
    %c0_i32 = arith.constant 0 : i32
    %c0_i32_0 = arith.constant 0 : i32
    %c0_i32_1 = arith.constant 0 : i32
    return %c0_i32, %c0_i32_0 : i32, i32
  }
  func.func @transform_5(%arg0: i32) -> (i32, i32) {
    %c0_i32 = arith.constant 0 : i32
    %c0_i32_0 = arith.constant 0 : i32
    %c0_i32_1 = arith.constant 0 : i32
    return %c0_i32, %c0_i32_0 : i32, i32
  }
  func.func @transform_6(%arg0: i32) -> (i32, i32) {
    %c0_i32 = arith.constant 0 : i32
    %c0_i32_0 = arith.constant 0 : i32
    %c0_i32_1 = arith.constant 0 : i32
    return %c0_i32, %c0_i32_0 : i32, i32
  }
  func.func @transform_7(%arg0: i32) -> (i32, i32) {
    %c0_i32 = arith.constant 0 : i32
    %c0_i32_0 = arith.constant 0 : i32
    %c0_i32_1 = arith.constant 0 : i32
    return %c0_i32, %c0_i32_0 : i32, i32
  }
}

</mosaic_0001>

<llo_original>
// kernel: triple_net_forward.2
$region0: #{triple_net_forward.2}
  #allocation0 [shape = 'u32[]', space=smem, size = 0x4, offset = 0x4, fixed_abs, tag = 'smem constant byte address 0x4 - core index']
  #allocation1 [shape = 'u32[72,128]{1,0:T(1,128)}', space=vmem, size = 0x9000, scoped, tag = 'internal scratch']
  %s0 = inlined_call_operand.vmem [shape: bf16[384,32], index: 0, kind: input, shape index: {}]
  %s1 = inlined_call_operand.vmem [shape: bf16[32,128], index: 1, kind: input, shape index: {}]
  %s2 = inlined_call_operand.vmem [shape: f32[1,128], index: 2, kind: input, shape index: {}]
  %s3 = inlined_call_operand.vmem [shape: f32[384,128], index: 3, kind: output, shape index: {}]
  %s4 = sld [smem:[#allocation0]]
  $region45: #{triple_net_forward.2} parent=0
    _
  %s6 = ssub.s32 1, %s4
  %s7 = scalar_select 0, %s6, %s4
  loop: start=0, step=1, limit=5
  $region2: #{triple_net_forward.2} parent=0 // loop_pre_header
    _
  $region3: #{triple_net_forward.2} parent=0 // loop_header
    %s9 = sphi 0, %s13
    %p10 = scmp.ge.s32.totalorder %s9, 5
    %s19 = sphi 0, %s21
    %s22 = sphi 0, %s19
    %s23 = sphi 0, %s22
    %s39 = sphi 0, %s23
    %s43 = sphi 0, %s43
    %s45 = sphi 0, %s43
    %s46 = sphi 0, %s45
    %s60 = sphi 0, %s46
    %s64 = sphi 0, %s64
    %s66 = sphi 0, %s64
    %s67 = sphi 0, %s66
    %s81 = sphi 0, %s67
    %s87 = sphi 0, %s89
    %s90 = sphi 0, %s87
    %s91 = sphi 0, %s90
    %s107 = sphi 0, %s91
  $region4: #{triple_net_forward.2} parent=0 // loop_header_branch
    %12 = sbr.rel (%p10) target = $region8
  $region5: #{triple_net_forward.2} parent=0 // loop_body
    %s14 = ssub.s32 %s9, 1
    %s15 = ssub.s32 %s9, 2
    %s16 = sadd.s32 %s9, 1
    %s17 = ssub.s32 %s9, %s16
    %p18 = scmp.eq.s32.totalorder %s17, 0
    %s20 = sadd.s32 %s19, 1
    %s21 = scalar_select %p18, %s19, %s20
    %p24 = pneg %p18
    %p25 = scmp.eq.s32.totalorder %s9, 2
    %p26 = por %p24, %p25
    %p27 = scmp.ne.s32.totalorder %s19, %s22
    %p28 = scmp.eq.s32.totalorder %s9, 0
    %p29 = por %p27, %p28
    %p30 = scmp.ne.s32.totalorder %s19, %s22
    %p31 = scmp.eq.s32.totalorder %s14, 2
    %p32 = por %p30, %p31
    %p33 = scmp.ne.s32.totalorder %s22, %s23
    %p34 = scmp.eq.s32.totalorder %s14, 0
    %p35 = por %p33, %p34
    %p36 = scmp.ne.s32.totalorder %s22, %s23
    %p37 = scmp.eq.s32.totalorder %s15, 2
    %p38 = por %p36, %p37
    %p40 = scmp.ne.s32.totalorder %s23, %s39
    %p41 = scmp.eq.s32.totalorder %s15, 0
    %p42 = por %p40, %p41
    %s44 = sadd.s32 %s43, 1
    %p47 = scmp.eq.s32.totalorder %s9, 2
    %p48 = scmp.ne.s32.totalorder %s43, %s45
    %p49 = scmp.eq.s32.totalorder %s9, 0
    %p50 = por %p48, %p49
    %p51 = scmp.ne.s32.totalorder %s43, %s45
    %p52 = scmp.eq.s32.totalorder %s14, 2
    %p53 = por %p51, %p52
    %p54 = scmp.ne.s32.totalorder %s45, %s46
    %p55 = scmp.eq.s32.totalorder %s14, 0
    %p56 = por %p54, %p55
    %p57 = scmp.ne.s32.totalorder %s45, %s46
    %p58 = scmp.eq.s32.totalorder %s15, 2
    %p59 = por %p57, %p58
    %p61 = scmp.ne.s32.totalorder %s46, %s60
    %p62 = scmp.eq.s32.totalorder %s15, 0
    %p63 = por %p61, %p62
    %s65 = sadd.s32 %s64, 1
    %p68 = scmp.eq.s32.totalorder %s9, 2
    %p69 = scmp.ne.s32.totalorder %s64, %s66
    %p70 = scmp.eq.s32.totalorder %s9, 0
    %p71 = por %p69, %p70
    %p72 = scmp.ne.s32.totalorder %s64, %s66
    %p73 = scmp.eq.s32.totalorder %s14, 2
    %p74 = por %p72, %p73
    %p75 = scmp.ne.s32.totalorder %s66, %s67
    %p76 = scmp.eq.s32.totalorder %s14, 0
    %p77 = por %p75, %p76
    %p78 = scmp.ne.s32.totalorder %s66, %s67
    %p79 = scmp.eq.s32.totalorder %s15, 2
    %p80 = por %p78, %p79
    %p82 = scmp.ne.s32.totalorder %s67, %s81
    %p83 = scmp.eq.s32.totalorder %s15, 0
    %p84 = por %p82, %p83
    %s85 = ssub.s32 %s9, %s16
    %p86 = scmp.eq.s32.totalorder %s85, 0
    %s88 = sadd.s32 %s87, 1
    %s89 = scalar_select %p86, %s87, %s88
    %p92 = pneg %p86
    %p93 = scmp.eq.s32.totalorder %s9, 2
    %p94 = por %p92, %p93
    %p95 = scmp.ne.s32.totalorder %s87, %s90
    %p96 = scmp.eq.s32.totalorder %s9, 0
    %p97 = por %p95, %p96
    %p98 = scmp.ne.s32.totalorder %s87, %s90
    %p99 = scmp.eq.s32.totalorder %s14, 2
    %p100 = por %p98, %p99
    %p101 = scmp.ne.s32.totalorder %s90, %s91
    %p102 = scmp.eq.s32.totalorder %s14, 0
    %p103 = por %p101, %p102
    %p104 = scmp.ne.s32.totalorder %s90, %s91
    %p105 = scmp.eq.s32.totalorder %s15, 2
    %p106 = por %p104, %p105
    %p108 = scmp.ne.s32.totalorder %s91, %s107
    %p109 = scmp.eq.s32.totalorder %s15, 0
    %p110 = por %p108, %p109
    %p111 = scmp.le.s32.totalorder 1, %s9
    %p112 = scmp.lt.s32.totalorder %s9, 4
    %p113 = pnand %p111, %p112
    %p114 = pneg %p113
    // Predicated region
    $region9: #{triple_net_forward.2} parent=5 // pred_check
      _
    $region10: #{triple_net_forward.2} parent=5 // pred_check_branch
      %116 = sbr.rel (%p113) target = $region12
    $region11: #{triple_net_forward.2} parent=5 // pred_region
      %s117 = ssub.s32 %s9, 1
      // Predicated region
      $region13: #{triple_net_forward.2} parent=11 // pred_check
        %p118 = pneg %p56
      $region14: #{triple_net_forward.2} parent=11 // pred_check_branch
        %120 = sbr.rel (%p118) target = $region16
      $region15: #{triple_net_forward.2} parent=11 // pred_region
        _
      $region16: #{triple_net_forward.2} parent=11 // pred_fallthru
        _
      // Predicated region
      $region17: #{triple_net_forward.2} parent=11 // pred_check
        %p121 = pneg %p77
      $region18: #{triple_net_forward.2} parent=11 // pred_check_branch
        %123 = sbr.rel (%p121) target = $region20
      $region19: #{triple_net_forward.2} parent=11 // pred_region
        _
      $region20: #{triple_net_forward.2} parent=11 // pred_fallthru
        _
    $region12: #{triple_net_forward.2} parent=5 // pred_fallthru
      _
    %p124 = scmp.lt.s32.totalorder %s9, 3
    // Predicated region
    $region21: #{triple_net_forward.2} parent=5 // pred_check
      %p125 = pneg %p124
    $region22: #{triple_net_forward.2} parent=5 // pred_check_branch
      %127 = sbr.rel (%p125) target = $region24
    $region23: #{triple_net_forward.2} parent=5 // pred_region
      // Predicated region
      $region25: #{triple_net_forward.2} parent=23 // pred_check
        %p128 = pneg %p29
      $region26: #{triple_net_forward.2} parent=23 // pred_check_branch
        %130 = sbr.rel (%p128) target = $region28
      $region27: #{triple_net_forward.2} parent=23 // pred_region
        %s131 = smul.u32 16, %s9
        %p132 = scmp.lt.s32.totalorder %s131, 47
        %s133 = scalar_select %p132, %s131, 47
        %s134 = smul.addr %s133, 4
        %s135 = scalar_lea.vmem %s0, %s134
        %s136 = smul.u32 16, %s9
      $region28: #{triple_net_forward.2} parent=23 // pred_fallthru
        _
    $region24: #{triple_net_forward.2} parent=5 // pred_fallthru
      _
    %p137 = scmp.le.s32.totalorder 1, %s9
    %p138 = scmp.lt.s32.totalorder %s9, 4
    %p139 = pnand %p137, %p138
    %p140 = pneg %p139
    // Predicated region
    $region29: #{triple_net_forward.2} parent=5 // pred_check
      _
    $region30: #{triple_net_forward.2} parent=5 // pred_check_branch
      %142 = sbr.rel (%p139) target = $region32
    $region31: #{triple_net_forward.2} parent=5 // pred_region
      %s143 = ssub.s32 %s9, 1
      %s144 = smul.u32 16, %s14
      %p145 = scmp.lt.s32.totalorder %s144, 47
      %s146 = scalar_select %p145, %s144, 47
      %s147 = smul.addr %s146, 4
      %s148 = scalar_lea.vmem %s0, %s147
      %p149 = pneg %p35
      %p150 = pneg %p32
      %p151 = pneg %p56
      %p152 = pneg %p53
      %p153 = pneg %p77
      %p154 = pneg %p74
      %p155 = pneg %p103
      %p156 = pneg %p100
      %s157 = smul.u32 16, %s14
      %p158 = scmp.lt.s32.totalorder %s157, 47
      %s159 = scalar_select %p158, %s157, 47
      %s160 = smul.addr %s159, 8
      %s161 = scalar_lea.vmem %s3, %s160
      %s162 = smul.u32 16, %s14
      %p163 = scmp.lt.s32.totalorder %s162, 47
      %s164 = scalar_select %p163, %s162, 47
      %s165 = smul.addr %s164, 4
      %s166 = scalar_lea.vmem %s0, %s165
      %s167 = smul.u32 16, %s14
      %s168 = smul.u32 16, %s14
      %p169 = scmp.lt.s32.totalorder %s168, 47
      %s170 = scalar_select %p169, %s168, 47
      %s171 = smul.addr %s170, 8
      %s172 = scalar_lea.vmem %s3, %s171
      %s173 = smul.u32 16, %s14
      %v175 = vld [vmem:[%s166] sm:$0xf]
      %v176 = vld [vmem:[%s166 + $0x4] sm:$0xf]
      %v177 = vld [vmem:[%s166 + $0x8] sm:$0xf]
      %v178 = vld [vmem:[%s166 + $0xc] sm:$0xf]
      %v179 = vld [vmem:[%s166 + $0x10] sm:$0xf]
      %v180 = vld [vmem:[%s166 + $0x14] sm:$0xf]
      %v181 = vld [vmem:[%s166 + $0x18] sm:$0xf]
      %v182 = vld [vmem:[%s166 + $0x1c] sm:$0xf]
      %v183 = vld [vmem:[%s166 + $0x20] sm:$0xf]
      %v184 = vld [vmem:[%s166 + $0x24] sm:$0xf]
      %v185 = vld [vmem:[%s166 + $0x28] sm:$0xf]
      %v186 = vld [vmem:[%s166 + $0x2c] sm:$0xf]
      %v187 = vld [vmem:[%s166 + $0x30] sm:$0xf]
      %v188 = vld [vmem:[%s166 + $0x34] sm:$0xf]
      %v189 = vld [vmem:[%s166 + $0x38] sm:$0xf]
      %v190 = vld [vmem:[%s166 + $0x3c] sm:$0xf]
      %v191 = vld [vmem:[%s1] sm:$0xf]
      %v192 = vld [vmem:[%s1 + $0x4] sm:$0xf]
      %v193 = vld [vmem:[%s1 + $0x8] sm:$0xf]
      %v194 = vld [vmem:[%s1 + $0xc] sm:$0xf]
      %v195 = vld [vmem:[%s2] sm:$0x1]
      %v197 = vperm.slane %v195, 0
      %v215 = vunpack.c.l.b16 %v175
      %v216 = vunpack.c.l.b16 %v176
      %v217 = vunpack.c.l.b16 %v177
      %v218 = vunpack.c.l.b16 %v178
      %v219 = vunpack.c.l.b16 %v179
      %v220 = vunpack.c.l.b16 %v180
      %v221 = vunpack.c.l.b16 %v181
      %v222 = vunpack.c.l.b16 %v182
      %v223 = vunpack.c.l.b16 %v183
      %v224 = vunpack.c.l.b16 %v184
      %v225 = vunpack.c.l.b16 %v185
      %v226 = vunpack.c.l.b16 %v186
      %v227 = vunpack.c.l.b16 %v187
      %v228 = vunpack.c.l.b16 %v188
      %v229 = vunpack.c.l.b16 %v189
      %v230 = vunpack.c.l.b16 %v190
      %v231 = vpack.c.b16 %v216, %v215
      %v232 = vpack.c.b16 %v218, %v217
      %v233 = vpack.c.b16 %v220, %v219
      %v234 = vpack.c.b16 %v222, %v221
      %v235 = vpack.c.b16 %v224, %v223
      %v236 = vpack.c.b16 %v226, %v225
      %v237 = vpack.c.b16 %v228, %v227
      %v238 = vpack.c.b16 %v230, %v229
      %v243 = vunpack.c.l.b16 %v191
      %v244 = vunpack.c.l.b16 %v192
      %v245 = vunpack.c.l.b16 %v193
      %v246 = vunpack.c.l.b16 %v194
      %v247 = vpack.c.b16 %v244, %v243
      %v248 = vpack.c.b16 %v246, %v245
      %vm251 = vcmask 261120
      %v253 = vsel %vm251, %v231, 0
      %v256 = vsel %vm251, %v232, 0
      %v259 = vsel %vm251, %v233, 0
      %v262 = vsel %vm251, %v234, 0
      %v265 = vsel %vm251, %v235, 0
      %v268 = vsel %vm251, %v236, 0
      %v271 = vsel %vm251, %v237, 0
      %v274 = vsel %vm251, %v238, 0
      %276 = vmatpush.bf16.msra.mxu0 0
      %277 = vmatpush.bf16.msra.mxu0 0
      %278 = vmatpush.bf16.msra.mxu0 0
      %279 = vmatpush.bf16.msra.mxu0 0
      %280 = vmatpush.bf16.msra.mxu0 0
      %281 = vmatpush.bf16.msra.mxu0 0
      %282 = vmatpush.bf16.msra.mxu0 %v248
      %283 = vmatpush.bf16.msra.mxu0 %v247
      %284 = vmatmul.bf16.gmra.mxu0 %v253
      %v285 = vpop.f32.mrf.mxu0
      %v286 = vadd.f32 %v197, %v285
      %v287 = vpop.f32.mrf.mxu0
      %v288 = vadd.f32 %v197, %v287
      %289 = vmatmul.bf16.gmra.mxu0 %v256
      %v290 = vpop.f32.mrf.mxu0
      %v291 = vadd.f32 %v197, %v290
      %v292 = vpop.f32.mrf.mxu0
      %v293 = vadd.f32 %v197, %v292
      %294 = vmatmul.bf16.gmra.mxu0 %v259
      %v295 = vpop.f32.mrf.mxu0
      %v296 = vadd.f32 %v197, %v295
      %v297 = vpop.f32.mrf.mxu0
      %v298 = vadd.f32 %v197, %v297
      %299 = vmatmul.bf16.gmra.mxu0 %v262
      %v300 = vpop.f32.mrf.mxu0
      %v301 = vadd.f32 %v197, %v300
      %v302 = vpop.f32.mrf.mxu0
      %v303 = vadd.f32 %v197, %v302
      %304 = vmatmul.bf16.gmra.mxu0 %v265
      %v305 = vpop.f32.mrf.mxu0
      %v306 = vadd.f32 %v197, %v305
      %v307 = vpop.f32.mrf.mxu0
      %v308 = vadd.f32 %v197, %v307
      %309 = vmatmul.bf16.gmra.mxu0 %v268
      %v310 = vpop.f32.mrf.mxu0
      %v311 = vadd.f32 %v197, %v310
      %v312 = vpop.f32.mrf.mxu0
      %v313 = vadd.f32 %v197, %v312
      %314 = vmatmul.bf16.gmra.mxu0 %v271
      %v315 = vpop.f32.mrf.mxu0
      %v316 = vadd.f32 %v197, %v315
      %v317 = vpop.f32.mrf.mxu0
      %v318 = vadd.f32 %v197, %v317
      %319 = vmatmul.bf16.gmra.mxu0 %v274
      %v320 = vpop.f32.mrf.mxu0
      %v321 = vadd.f32 %v197, %v320
      %v322 = vpop.f32.mrf.mxu0
      %v323 = vadd.f32 %v197, %v322
      %324 = vdwg.mxu0
      %v325 = vmax.f32 %v286, 0.0
      %v326 = vmax.f32 %v288, 0.0
      %v327 = vmax.f32 %v291, 0.0
      %v328 = vmax.f32 %v293, 0.0
      %v329 = vmax.f32 %v296, 0.0
      %v330 = vmax.f32 %v298, 0.0
      %v331 = vmax.f32 %v301, 0.0
      %v332 = vmax.f32 %v303, 0.0
      %v333 = vmax.f32 %v306, 0.0
      %v334 = vmax.f32 %v308, 0.0
      %v335 = vmax.f32 %v311, 0.0
      %v336 = vmax.f32 %v313, 0.0
      %v337 = vmax.f32 %v316, 0.0
      %v338 = vmax.f32 %v318, 0.0
      %v339 = vmax.f32 %v321, 0.0
      %v340 = vmax.f32 %v323, 0.0
      %341 = vst [vmem:[%s172] sm:$0xff] %v325
      %342 = vst [vmem:[%s172 + $0x8] sm:$0xff] %v326
      %343 = vst [vmem:[%s172 + $0x10] sm:$0xff] %v327
      %344 = vst [vmem:[%s172 + $0x18] sm:$0xff] %v328
      %345 = vst [vmem:[%s172 + $0x20] sm:$0xff] %v329
      %346 = vst [vmem:[%s172 + $0x28] sm:$0xff] %v330
      %347 = vst [vmem:[%s172 + $0x30] sm:$0xff] %v331
      %348 = vst [vmem:[%s172 + $0x38] sm:$0xff] %v332
      %349 = vst [vmem:[%s172 + $0x40] sm:$0xff] %v333
      %350 = vst [vmem:[%s172 + $0x48] sm:$0xff] %v334
      %351 = vst [vmem:[%s172 + $0x50] sm:$0xff] %v335
      %352 = vst [vmem:[%s172 + $0x58] sm:$0xff] %v336
      %353 = vst [vmem:[%s172 + $0x60] sm:$0xff] %v337
      %354 = vst [vmem:[%s172 + $0x68] sm:$0xff] %v338
      %355 = vst [vmem:[%s172 + $0x70] sm:$0xff] %v339
      %356 = vst [vmem:[%s172 + $0x78] sm:$0xff] %v340
      %s357 = smul.u32 16, %s14
      %p358 = scmp.lt.s32.totalorder %s357, 47
      %s359 = scalar_select %p358, %s357, 47
      %s360 = smul.addr %s359, 8
      %s361 = scalar_lea.vmem %s3, %s360
      // Predicated region
      $region33: #{triple_net_forward.2} parent=31 // pred_check
        %p362 = pneg %p100
      $region34: #{triple_net_forward.2} parent=31 // pred_check_branch
        %364 = sbr.rel (%p362) target = $region36
      $region35: #{triple_net_forward.2} parent=31 // pred_region
        %s365 = smul.u32 16, %s14
      $region36: #{triple_net_forward.2} parent=31 // pred_fallthru
        _
    $region32: #{triple_net_forward.2} parent=5 // pred_fallthru
      _
    %p366 = scmp.le.s32.totalorder 2, %s9
    // Predicated region
    $region37: #{triple_net_forward.2} parent=5 // pred_check
      %p367 = pneg %p366
    $region38: #{triple_net_forward.2} parent=5 // pred_check_branch
      %369 = sbr.rel (%p367) target = $region40
    $region39: #{triple_net_forward.2} parent=5 // pred_region
      %s370 = ssub.s32 %s9, 2
      // Predicated region
      $region41: #{triple_net_forward.2} parent=39 // pred_check
        %p371 = pneg %p106
      $region42: #{triple_net_forward.2} parent=39 // pred_check_branch
        %373 = sbr.rel (%p371) target = $region44
      $region43: #{triple_net_forward.2} parent=39 // pred_region
        %s374 = smul.u32 16, %s15
        %p375 = scmp.lt.s32.totalorder %s374, 47
        %s376 = scalar_select %p375, %s374, 47
        %s377 = smul.addr %s376, 8
        %s378 = scalar_lea.vmem %s3, %s377
      $region44: #{triple_net_forward.2} parent=39 // pred_fallthru
        _
    $region40: #{triple_net_forward.2} parent=5 // pred_fallthru
      _
  $region6: #{triple_net_forward.2} parent=0 // loop_footer
    %s13 = sadd.s32 1, %s9
  $region7: #{triple_net_forward.2} parent=0 // loop_footer_branch
    %8 = sbr.rel target = $region3
  $region8: #{triple_net_forward.2} parent=0 // loop_exit
    _

// kernel: triple_net_forward.3
$region0: #{triple_net_forward.3}
  #allocation0 [shape = 'u32[]', space=smem, size = 0x4, offset = 0x4, fixed_abs, tag = 'smem constant byte address 0x4 - core index']
  #allocation1 [shape = 'u32[72,128]{1,0:T(1,128)}', space=vmem, size = 0x9000, scoped, tag = 'internal scratch']
  %s0 = inlined_call_operand.vmem [shape: bf16[6,16,144], index: 0, kind: input, shape index: {}]
  %s1 = inlined_call_operand.vmem [shape: bf16[144,32], index: 1, kind: input, shape index: {}]
  %s2 = inlined_call_operand.vmem [shape: f32[1,32], index: 2, kind: input, shape index: {}]
  %s3 = inlined_call_operand.vmem [shape: f32[64,256], index: 3, kind: input, shape index: {}]
  %s4 = inlined_call_operand.vmem [shape: f32[1,256], index: 4, kind: input, shape index: {}]
  %s5 = inlined_call_operand.vmem [shape: f32[256,128], index: 5, kind: input, shape index: {}]
  %s6 = inlined_call_operand.vmem [shape: f32[1,128], index: 6, kind: input, shape index: {}]
  %s7 = inlined_call_operand.vmem [shape: f32[6,128], index: 7, kind: output, shape index: {}]
  %s8 = sld [smem:[#allocation0]]
  $region38: #{triple_net_forward.3} parent=0
    _
  %s10 = ssub.s32 1, %s8
  %s11 = scalar_select 0, %s10, %s8
  // Predicated region
  $region2: #{triple_net_forward.3} parent=0 // pred_check
    _
  $region3: #{triple_net_forward.3} parent=0 // pred_check_branch
    %13 = sbr.rel (0) target = $region5
  $region4: #{triple_net_forward.3} parent=0 // pred_region
    _
  $region5: #{triple_net_forward.3} parent=0 // pred_fallthru
    _
  // Predicated region
  $region6: #{triple_net_forward.3} parent=0 // pred_check
    _
  $region7: #{triple_net_forward.3} parent=0 // pred_check_branch
    %15 = sbr.rel (0) target = $region9
  $region8: #{triple_net_forward.3} parent=0 // pred_region
    _
  $region9: #{triple_net_forward.3} parent=0 // pred_fallthru
    _
  // Predicated region
  $region10: #{triple_net_forward.3} parent=0 // pred_check
    _
  $region11: #{triple_net_forward.3} parent=0 // pred_check_branch
    %17 = sbr.rel (0) target = $region13
  $region12: #{triple_net_forward.3} parent=0 // pred_region
    _
  $region13: #{triple_net_forward.3} parent=0 // pred_fallthru
    _
  // Predicated region
  $region14: #{triple_net_forward.3} parent=0 // pred_check
    _
  $region15: #{triple_net_forward.3} parent=0 // pred_check_branch
    %19 = sbr.rel (0) target = $region17
  $region16: #{triple_net_forward.3} parent=0 // pred_region
    _
  $region17: #{triple_net_forward.3} parent=0 // pred_fallthru
    _
  // Predicated region
  $region18: #{triple_net_forward.3} parent=0 // pred_check
    _
  $region19: #{triple_net_forward.3} parent=0 // pred_check_branch
    %21 = sbr.rel (0) target = $region21
  $region20: #{triple_net_forward.3} parent=0 // pred_region
    _
  $region21: #{triple_net_forward.3} parent=0 // pred_fallthru
    _
  // Predicated region
  $region22: #{triple_net_forward.3} parent=0 // pred_check
    _
  $region23: #{triple_net_forward.3} parent=0 // pred_check_branch
    %23 = sbr.rel (0) target = $region25
  $region24: #{triple_net_forward.3} parent=0 // pred_region
    _
  $region25: #{triple_net_forward.3} parent=0 // pred_fallthru
    _
  // Predicated region
  $region26: #{triple_net_forward.3} parent=0 // pred_check
    _
  $region27: #{triple_net_forward.3} parent=0 // pred_check_branch
    %25 = sbr.rel (0) target = $region29
  $region28: #{triple_net_forward.3} parent=0 // pred_region
    _
  $region29: #{triple_net_forward.3} parent=0 // pred_fallthru
    _
  %v27 = vld [vmem:[%s0] sm:$0xff]
  %v28 = vld [vmem:[%s0 + $0x8] sm:$0xff]
  %v29 = vld [vmem:[%s0 + $0x10] sm:$0xff]
  %v30 = vld [vmem:[%s0 + $0x18] sm:$0xff]
  %v31 = vld [vmem:[%s0 + $0x20] sm:$0xff]
  %v32 = vld [vmem:[%s0 + $0x28] sm:$0xff]
  %v33 = vld [vmem:[%s0 + $0x30] sm:$0xff]
  %v34 = vld [vmem:[%s0 + $0x38] sm:$0xff]
  %v35 = vld [vmem:[%s0 + $0x40] sm:$0xff]
  %v36 = vld [vmem:[%s0 + $0x48] sm:$0xff]
  %v37 = vld [vmem:[%s0 + $0x50] sm:$0xff]
  %v38 = vld [vmem:[%s0 + $0x58] sm:$0xff]
  %v39 = vld [vmem:[%s1] sm:$0xf]
  %v40 = vld [vmem:[%s1 + $0x4] sm:$0xf]
  %v41 = vld [vmem:[%s1 + $0x8] sm:$0xf]
  %v42 = vld [vmem:[%s1 + $0xc] sm:$0xf]
  %v43 = vld [vmem:[%s1 + $0x10] sm:$0xf]
  %v44 = vld [vmem:[%s1 + $0x14] sm:$0xf]
  %v45 = vld [vmem:[%s1 + $0x18] sm:$0xf]
  %v46 = vld [vmem:[%s1 + $0x1c] sm:$0xf]
  %v47 = vld [vmem:[%s1 + $0x20] sm:$0xf]
  %v48 = vld [vmem:[%s1 + $0x24] sm:$0xf]
  %v49 = vld [vmem:[%s1 + $0x28] sm:$0xf]
  %v50 = vld [vmem:[%s1 + $0x2c] sm:$0xf]
  %v51 = vld [vmem:[%s1 + $0x30] sm:$0xf]
  %v52 = vld [vmem:[%s1 + $0x34] sm:$0xf]
  %v53 = vld [vmem:[%s1 + $0x38] sm:$0xf]
  %v54 = vld [vmem:[%s1 + $0x3c] sm:$0xf]
  %v55 = vld [vmem:[%s1 + $0x40] sm:$0xf]
  %v56 = vld [vmem:[%s1 + $0x44] sm:$0xf]
  %v57 = vld [vmem:[%s2] sm:$0x1]
  %v59 = vperm.slane %v57, 0
  %v73 = vunpack.c.l.b16 %v27
  %v74 = vunpack.c.h.b16 %v27
  %v75 = vunpack.c.l.b16 %v28
  %v76 = vunpack.c.h.b16 %v28
  %v77 = vunpack.c.l.b16 %v29
  %v78 = vunpack.c.h.b16 %v29
  %v79 = vunpack.c.l.b16 %v30
  %v80 = vunpack.c.h.b16 %v30
  %v81 = vunpack.c.l.b16 %v31
  %v82 = vunpack.c.h.b16 %v31
  %v83 = vunpack.c.l.b16 %v32
  %v84 = vunpack.c.h.b16 %v32
  %v85 = vunpack.c.l.b16 %v33
  %v86 = vunpack.c.h.b16 %v33
  %v87 = vunpack.c.l.b16 %v34
  %v88 = vunpack.c.h.b16 %v34
  %v89 = vunpack.c.l.b16 %v35
  %v90 = vunpack.c.h.b16 %v35
  %v91 = vunpack.c.l.b16 %v36
  %v92 = vunpack.c.h.b16 %v36
  %v93 = vunpack.c.l.b16 %v37
  %v94 = vunpack.c.h.b16 %v37
  %v95 = vunpack.c.l.b16 %v38
  %v96 = vunpack.c.h.b16 %v38
  %v97 = vpack.c.b16 %v75, %v73
  %v98 = vpack.c.b16 %v76, %v74
  %v99 = vpack.c.b16 %v79, %v77
  %v100 = vpack.c.b16 %v80, %v78
  %v101 = vpack.c.b16 %v83, %v81
  %v102 = vpack.c.b16 %v84, %v82
  %v103 = vpack.c.b16 %v87, %v85
  %v104 = vpack.c.b16 %v88, %v86
  %v105 = vpack.c.b16 %v91, %v89
  %v106 = vpack.c.b16 %v92, %v90
  %v107 = vpack.c.b16 %v95, %v93
  %v108 = vpack.c.b16 %v96, %v94
  %v133 = vunpack.c.l.b16 %v39
  %v134 = vunpack.c.l.b16 %v40
  %v135 = vunpack.c.l.b16 %v41
  %v136 = vunpack.c.l.b16 %v42
  %v137 = vunpack.c.l.b16 %v43
  %v138 = vunpack.c.l.b16 %v44
  %v139 = vunpack.c.l.b16 %v45
  %v140 = vunpack.c.l.b16 %v46
  %v141 = vunpack.c.l.b16 %v47
  %v142 = vunpack.c.l.b16 %v48
  %v143 = vunpack.c.l.b16 %v49
  %v144 = vunpack.c.l.b16 %v50
  %v145 = vunpack.c.l.b16 %v51
  %v146 = vunpack.c.l.b16 %v52
  %v147 = vunpack.c.l.b16 %v53
  %v148 = vunpack.c.l.b16 %v54
  %v149 = vunpack.c.l.b16 %v55
  %v150 = vunpack.c.l.b16 %v56
  %v151 = vpack.c.b16 %v134, %v133
  %v152 = vpack.c.b16 %v136, %v135
  %v153 = vpack.c.b16 %v138, %v137
  %v154 = vpack.c.b16 %v140, %v139
  %v155 = vpack.c.b16 %v142, %v141
  %v156 = vpack.c.b16 %v144, %v143
  %v157 = vpack.c.b16 %v146, %v145
  %v158 = vpack.c.b16 %v148, %v147
  %v159 = vpack.c.b16 %v150, %v149
  %vm169 = vcmask 130048
  %v171 = vsel %vm169, %v98, 0
  %v174 = vsel %vm169, %v100, 0
  %v177 = vsel %vm169, %v102, 0
  %v180 = vsel %vm169, %v104, 0
  %v183 = vsel %vm169, %v106, 0
  %v186 = vsel %vm169, %v108, 0
  %188 = vmatpush.bf16.msra.mxu0 %v158
  %189 = vmatpush.bf16.msra.mxu0 %v157
  %190 = vmatpush.bf16.msra.mxu0 %v156
  %191 = vmatpush.bf16.msra.mxu0 %v155
  %192 = vmatpush.bf16.msra.mxu0 %v154
  %193 = vmatpush.bf16.msra.mxu0 %v153
  %194 = vmatpush.bf16.msra.mxu0 %v152
  %195 = vmatpush.bf16.msra.mxu0 %v151
  %196 = vmatmul.bf16.gmra.mxu0 %v97
  %v197 = vpop.f32.mrf.mxu0
  %v198 = vadd.f32 %v59, %v197
  %v199 = vpop.f32.mrf.mxu0
  %v200 = vadd.f32 %v59, %v199
  %201 = vmatmul.bf16.gmra.mxu0 %v99
  %v202 = vpop.f32.mrf.mxu0
  %v203 = vadd.f32 %v59, %v202
  %v204 = vpop.f32.mrf.mxu0
  %v205 = vadd.f32 %v59, %v204
  %206 = vmatmul.bf16.gmra.mxu0 %v101
  %v207 = vpop.f32.mrf.mxu0
  %v208 = vadd.f32 %v59, %v207
  %v209 = vpop.f32.mrf.mxu0
  %v210 = vadd.f32 %v59, %v209
  %211 = vmatmul.bf16.gmra.mxu0 %v103
  %v212 = vpop.f32.mrf.mxu0
  %v213 = vadd.f32 %v59, %v212
  %v214 = vpop.f32.mrf.mxu0
  %v215 = vadd.f32 %v59, %v214
  %216 = vmatmul.bf16.gmra.mxu0 %v105
  %v217 = vpop.f32.mrf.mxu0
  %v218 = vadd.f32 %v59, %v217
  %v219 = vpop.f32.mrf.mxu0
  %v220 = vadd.f32 %v59, %v219
  %221 = vmatmul.bf16.gmra.mxu0 %v107
  %v222 = vpop.f32.mrf.mxu0
  %v223 = vadd.f32 %v59, %v222
  %v224 = vpop.f32.mrf.mxu0
  %v225 = vadd.f32 %v59, %v224
  %226 = vdwg.mxu0
  %227 = vmatpush.bf16.msra.mxu0 0
  %228 = vmatpush.bf16.msra.mxu0 0
  %229 = vmatpush.bf16.msra.mxu0 0
  %230 = vmatpush.bf16.msra.mxu0 0
  %231 = vmatpush.bf16.msra.mxu0 0
  %232 = vmatpush.bf16.msra.mxu0 0
  %233 = vmatpush.bf16.msra.mxu0 0
  %234 = vmatpush.bf16.msra.mxu0 %v159
  %235 = vmatmul.bf16.gmra.mxu0 %v171
  %v236 = vpop.f32.mrf.mxu0
  %v237 = vadd.f32 %v198, %v236
  %v238 = vpop.f32.mrf.mxu0
  %v239 = vadd.f32 %v200, %v238
  %240 = vmatmul.bf16.gmra.mxu0 %v174
  %v241 = vpop.f32.mrf.mxu0
  %v242 = vadd.f32 %v203, %v241
  %v243 = vpop.f32.mrf.mxu0
  %v244 = vadd.f32 %v205, %v243
  %245 = vmatmul.bf16.gmra.mxu0 %v177
  %v246 = vpop.f32.mrf.mxu0
  %v247 = vadd.f32 %v208, %v246
  %v248 = vpop.f32.mrf.mxu0
  %v249 = vadd.f32 %v210, %v248
  %250 = vmatmul.bf16.gmra.mxu0 %v180
  %v251 = vpop.f32.mrf.mxu0
  %v252 = vadd.f32 %v213, %v251
  %v253 = vpop.f32.mrf.mxu0
  %v254 = vadd.f32 %v215, %v253
  %255 = vmatmul.bf16.gmra.mxu0 %v183
  %v256 = vpop.f32.mrf.mxu0
  %v257 = vadd.f32 %v218, %v256
  %v258 = vpop.f32.mrf.mxu0
  %v259 = vadd.f32 %v220, %v258
  %260 = vmatmul.bf16.gmra.mxu0 %v186
  %v261 = vpop.f32.mrf.mxu0
  %v262 = vadd.f32 %v223, %v261
  %v263 = vpop.f32.mrf.mxu0
  %v264 = vadd.f32 %v225, %v263
  %265 = vdwg.mxu0
  %v266 = vmax.f32 %v237, 0.0
  %v267 = vmax.f32 %v239, 0.0
  %v268 = vmax.f32 %v242, 0.0
  %v269 = vmax.f32 %v244, 0.0
  %v270 = vmax.f32 %v247, 0.0
  %v271 = vmax.f32 %v249, 0.0
  %v272 = vmax.f32 %v252, 0.0
  %v273 = vmax.f32 %v254, 0.0
  %v274 = vmax.f32 %v257, 0.0
  %v275 = vmax.f32 %v259, 0.0
  %v276 = vmax.f32 %v262, 0.0
  %v277 = vmax.f32 %v264, 0.0
  %vm278 = vcmask 261120
  %v279 = vsel %vm278, %v266, -inf
  %v280 = vsel %vm278, %v267, -inf
  %v281 = vmax.f32 %v279, %v280
  %v282 = vrot.slane %v281, 4
  %v283 = vmax.f32 %v281, %v282
  %v284 = vrot.slane %v283, 2
  %v285 = vmax.f32 %v283, %v284
  %v286 = vrot.slane %v285, 1
  %v287 = vmax.f32 %v285, %v286
  %v288 = vsel %vm278, %v268, -inf
  %v289 = vsel %vm278, %v269, -inf
  %v290 = vmax.f32 %v288, %v289
  %v291 = vrot.slane %v290, 4
  %v292 = vmax.f32 %v290, %v291
  %v293 = vrot.slane %v292, 2
  %v294 = vmax.f32 %v292, %v293
  %v295 = vrot.slane %v294, 1
  %v296 = vmax.f32 %v294, %v295
  %v297 = vsel %vm278, %v270, -inf
  %v298 = vsel %vm278, %v271, -inf
  %v299 = vmax.f32 %v297, %v298
  %v300 = vrot.slane %v299, 4
  %v301 = vmax.f32 %v299, %v300
  %v302 = vrot.slane %v301, 2
  %v303 = vmax.f32 %v301, %v302
  %v304 = vrot.slane %v303, 1
  %v305 = vmax.f32 %v303, %v304
  %v306 = vsel %vm278, %v272, -inf
  %v307 = vsel %vm278, %v273, -inf
  %v308 = vmax.f32 %v306, %v307
  %v309 = vrot.slane %v308, 4
  %v310 = vmax.f32 %v308, %v309
  %v311 = vrot.slane %v310, 2
  %v312 = vmax.f32 %v310, %v311
  %v313 = vrot.slane %v312, 1
  %v314 = vmax.f32 %v312, %v313
  %v315 = vsel %vm278, %v274, -inf
  %v316 = vsel %vm278, %v275, -inf
  %v317 = vmax.f32 %v315, %v316
  %v318 = vrot.slane %v317, 4
  %v319 = vmax.f32 %v317, %v318
  %v320 = vrot.slane %v319, 2
  %v321 = vmax.f32 %v319, %v320
  %v322 = vrot.slane %v321, 1
  %v323 = vmax.f32 %v321, %v322
  %v324 = vsel %vm278, %v276, -inf
  %v325 = vsel %vm278, %v277, -inf
  %v326 = vmax.f32 %v324, %v325
  %v327 = vrot.slane %v326, 4
  %v328 = vmax.f32 %v326, %v327
  %v329 = vrot.slane %v328, 2
  %v330 = vmax.f32 %v328, %v329
  %v331 = vrot.slane %v330, 1
  %v332 = vmax.f32 %v330, %v331
  %v333 = vsel %vm278, %v266, 0.0
  %v334 = vsel %vm278, %v267, 0.0
  %v335 = vadd.f32 %v333, %v334
  %v336 = vrot.slane %v335, 4
  %v337 = vadd.f32 %v335, %v336
  %v338 = vrot.slane %v337, 2
  %v339 = vadd.f32 %v337, %v338
  %v340 = vrot.slane %v339, 1
  %v341 = vadd.f32 %v339, %v340
  %v342 = vsel %vm278, %v268, 0.0
  %v343 = vsel %vm278, %v269, 0.0
  %v344 = vadd.f32 %v342, %v343
  %v345 = vrot.slane %v344, 4
  %v346 = vadd.f32 %v344, %v345
  %v347 = vrot.slane %v346, 2
  %v348 = vadd.f32 %v346, %v347
  %v349 = vrot.slane %v348, 1
  %v350 = vadd.f32 %v348, %v349
  %v351 = vsel %vm278, %v270, 0.0
  %v352 = vsel %vm278, %v271, 0.0
  %v353 = vadd.f32 %v351, %v352
  %v354 = vrot.slane %v353, 4
  %v355 = vadd.f32 %v353, %v354
  %v356 = vrot.slane %v355, 2
  %v357 = vadd.f32 %v355, %v356
  %v358 = vrot.slane %v357, 1
  %v359 = vadd.f32 %v357, %v358
  %v360 = vsel %vm278, %v272, 0.0
  %v361 = vsel %vm278, %v273, 0.0
  %v362 = vadd.f32 %v360, %v361
  %v363 = vrot.slane %v362, 4
  %v364 = vadd.f32 %v362, %v363
  %v365 = vrot.slane %v364, 2
  %v366 = vadd.f32 %v364, %v365
  %v367 = vrot.slane %v366, 1
  %v368 = vadd.f32 %v366, %v367
  %v369 = vsel %vm278, %v274, 0.0
  %v370 = vsel %vm278, %v275, 0.0
  %v371 = vadd.f32 %v369, %v370
  %v372 = vrot.slane %v371, 4
  %v373 = vadd.f32 %v371, %v372
  %v374 = vrot.slane %v373, 2
  %v375 = vadd.f32 %v373, %v374
  %v376 = vrot.slane %v375, 1
  %v377 = vadd.f32 %v375, %v376
  %v378 = vsel %vm278, %v276, 0.0
  %v379 = vsel %vm278, %v277, 0.0
  %v380 = vadd.f32 %v378, %v379
  %v381 = vrot.slane %v380, 4
  %v382 = vadd.f32 %v380, %v381
  %v383 = vrot.slane %v382, 2
  %v384 = vadd.f32 %v382, %v383
  %v385 = vrot.slane %v384, 1
  %v386 = vadd.f32 %v384, %v385
  %v387 = vmul.f32 %v341, 0.0625
  %v388 = vmul.f32 %v350, 0.0625
  %v389 = vmul.f32 %v359, 0.0625
  %v390 = vmul.f32 %v368, 0.0625
  %v391 = vmul.f32 %v377, 0.0625
  %v392 = vmul.f32 %v386, 0.0625
  %v393 = vld [vmem:[%s3] sm:$0xff]
  %v394 = vld [vmem:[%s3 + $0x8] sm:$0xff]
  %v395 = vld [vmem:[%s3 + $0x10] sm:$0xff]
  %v396 = vld [vmem:[%s3 + $0x18] sm:$0xff]
  %v397 = vld [vmem:[%s3 + $0x20] sm:$0xff]
  %v398 = vld [vmem:[%s3 + $0x28] sm:$0xff]
  %v399 = vld [vmem:[%s3 + $0x30] sm:$0xff]
  %v400 = vld [vmem:[%s3 + $0x38] sm:$0xff]
  %v401 = vld [vmem:[%s3 + $0x40] sm:$0xff]
  %v402 = vld [vmem:[%s3 + $0x48] sm:$0xff]
  %v403 = vld [vmem:[%s3 + $0x50] sm:$0xff]
  %v404 = vld [vmem:[%s3 + $0x58] sm:$0xff]
  %v405 = vld [vmem:[%s3 + $0x60] sm:$0xff]
  %v406 = vld [vmem:[%s3 + $0x68] sm:$0xff]
  %v407 = vld [vmem:[%s3 + $0x70] sm:$0xff]
  %v408 = vld [vmem:[%s3 + $0x78] sm:$0xff]
  %vm415 = vcmask 1041409
  %v416 = vsel %vm415, %v388, %v387
  %vm417 = vcmask 1042434
  %v418 = vsel %vm417, %v389, %v416
  %vm419 = vcmask 1043459
  %v420 = vsel %vm419, %v390, %v418
  %vm421 = vcmask 1044484
  %v422 = vsel %vm421, %v391, %v420
  %vm423 = vcmask 1045509
  %v424 = vsel %vm423, %v392, %v422
  %v425 = vsel %vm278, %v424, 0
  %427 = vmatpush.msra.mxu0 0.0
  %428 = vmatpush.msra.mxu0 0.0
  %429 = vmatpush.msra.mxu0 0.0
  %430 = vmatpush.msra.mxu0 0.0
  %431 = vmatpush.msra.mxu0 0.0
  %432 = vmatpush.msra.mxu0 0.0
  %433 = vmatpush.msra.mxu0 0.0
  %434 = vmatpush.msra.mxu0 0.0
  %435 = vmatpush.msra.mxu0 0.0
  %436 = vmatpush.msra.mxu0 0.0
  %437 = vmatpush.msra.mxu0 0.0
  %438 = vmatpush.msra.mxu0 0.0
  %439 = vmatpush.msra.mxu0 %v407
  %440 = vmatpush.msra.mxu0 %v405
  %441 = vmatpush.msra.mxu0 %v403
  %442 = vmatpush.msra.mxu0 %v401
  %443 = vmatmul.f32.gmra.mxu0 %v425
  %v444 = vpop.f32.mrf.mxu0
  %v445 = vadd.f32 0.0, %v444
  %446 = vdwg.mxu0
  %447 = vmatpush.msra.mxu0 0.0
  %448 = vmatpush.msra.mxu0 0.0
  %449 = vmatpush.msra.mxu0 0.0
  %450 = vmatpush.msra.mxu0 0.0
  %451 = vmatpush.msra.mxu0 0.0
  %452 = vmatpush.msra.mxu0 0.0
  %453 = vmatpush.msra.mxu0 0.0
  %454 = vmatpush.msra.mxu0 0.0
  %455 = vmatpush.msra.mxu0 0.0
  %456 = vmatpush.msra.mxu0 0.0
  %457 = vmatpush.msra.mxu0 0.0
  %458 = vmatpush.msra.mxu0 0.0
  %459 = vmatpush.msra.mxu0 %v408
  %460 = vmatpush.msra.mxu0 %v406
  %461 = vmatpush.msra.mxu0 %v404
  %462 = vmatpush.msra.mxu0 %v402
  %463 = vmatmul.f32.gmra.mxu0 %v425
  %v464 = vpop.f32.mrf.mxu0
  %v465 = vadd.f32 0.0, %v464
  %466 = vdwg.mxu0
  %v473 = vsel %vm415, %v296, %v287
  %v474 = vsel %vm417, %v305, %v473
  %v475 = vsel %vm419, %v314, %v474
  %v476 = vsel %vm421, %v323, %v475
  %v477 = vsel %vm423, %v332, %v476
  %v478 = vsel %vm278, %v477, 0
  %480 = vmatpush.msra.mxu0 0.0
  %481 = vmatpush.msra.mxu0 0.0
  %482 = vmatpush.msra.mxu0 0.0
  %483 = vmatpush.msra.mxu0 0.0
  %484 = vmatpush.msra.mxu0 0.0
  %485 = vmatpush.msra.mxu0 0.0
  %486 = vmatpush.msra.mxu0 0.0
  %487 = vmatpush.msra.mxu0 0.0
  %488 = vmatpush.msra.mxu0 0.0
  %489 = vmatpush.msra.mxu0 0.0
  %490 = vmatpush.msra.mxu0 0.0
  %491 = vmatpush.msra.mxu0 0.0
  %492 = vmatpush.msra.mxu0 %v399
  %493 = vmatpush.msra.mxu0 %v397
  %494 = vmatpush.msra.mxu0 %v395
  %495 = vmatpush.msra.mxu0 %v393
  %496 = vmatmul.f32.gmra.mxu0 %v478
  %v497 = vpop.f32.mrf.mxu0
  %v498 = vadd.f32 %v445, %v497
  %499 = vdwg.mxu0
  %500 = vmatpush.msra.mxu0 0.0
  %501 = vmatpush.msra.mxu0 0.0
  %502 = vmatpush.msra.mxu0 0.0
  %503 = vmatpush.msra.mxu0 0.0
  %504 = vmatpush.msra.mxu0 0.0
  %505 = vmatpush.msra.mxu0 0.0
  %506 = vmatpush.msra.mxu0 0.0
  %507 = vmatpush.msra.mxu0 0.0
  %508 = vmatpush.msra.mxu0 0.0
  %509 = vmatpush.msra.mxu0 0.0
  %510 = vmatpush.msra.mxu0 0.0
  %511 = vmatpush.msra.mxu0 0.0
  %512 = vmatpush.msra.mxu0 %v400
  %513 = vmatpush.msra.mxu0 %v398
  %514 = vmatpush.msra.mxu0 %v396
  %515 = vmatpush.msra.mxu0 %v394
  %516 = vmatmul.f32.gmra.mxu0 %v478
  %v517 = vpop.f32.mrf.mxu0
  %v518 = vadd.f32 %v465, %v517
  %519 = vdwg.mxu0
  %v520 = vld [vmem:[%s4] sm:$0x3]
  %v522 = vperm.slane %v520, 0
  %v523 = vperm.slane %v520, 1
  %v526 = vadd.f32 %v498, %v522
  %v527 = vadd.f32 %v518, %v523
  %v528 = vmax.f32 %v526, 0.0
  %v529 = vmax.f32 %v527, 0.0
  %v530 = vld [vmem:[%s5] sm:$0xff]
  %v531 = vld [vmem:[%s5 + $0x8] sm:$0xff]
  %v532 = vld [vmem:[%s5 + $0x10] sm:$0xff]
  %v533 = vld [vmem:[%s5 + $0x18] sm:$0xff]
  %v534 = vld [vmem:[%s5 + $0x20] sm:$0xff]
  %v535 = vld [vmem:[%s5 + $0x28] sm:$0xff]
  %v536 = vld [vmem:[%s5 + $0x30] sm:$0xff]
  %v537 = vld [vmem:[%s5 + $0x38] sm:$0xff]
  %v538 = vld [vmem:[%s5 + $0x40] sm:$0xff]
  %v539 = vld [vmem:[%s5 + $0x48] sm:$0xff]
  %v540 = vld [vmem:[%s5 + $0x50] sm:$0xff]
  %v541 = vld [vmem:[%s5 + $0x58] sm:$0xff]
  %v542 = vld [vmem:[%s5 + $0x60] sm:$0xff]
  %v543 = vld [vmem:[%s5 + $0x68] sm:$0xff]
  %v544 = vld [vmem:[%s5 + $0x70] sm:$0xff]
  %v545 = vld [vmem:[%s5 + $0x78] sm:$0xff]
  %v546 = vld [vmem:[%s5 + $0x80] sm:$0xff]
  %v547 = vld [vmem:[%s5 + $0x88] sm:$0xff]
  %v548 = vld [vmem:[%s5 + $0x90] sm:$0xff]
  %v549 = vld [vmem:[%s5 + $0x98] sm:$0xff]
  %v550 = vld [vmem:[%s5 + $0xa0] sm:$0xff]
  %v551 = vld [vmem:[%s5 + $0xa8] sm:$0xff]
  %v552 = vld [vmem:[%s5 + $0xb0] sm:$0xff]
  %v553 = vld [vmem:[%s5 + $0xb8] sm:$0xff]
  %v554 = vld [vmem:[%s5 + $0xc0] sm:$0xff]
  %v555 = vld [vmem:[%s5 + $0xc8] sm:$0xff]
  %v556 = vld [vmem:[%s5 + $0xd0] sm:$0xff]
  %v557 = vld [vmem:[%s5 + $0xd8] sm:$0xff]
  %v558 = vld [vmem:[%s5 + $0xe0] sm:$0xff]
  %v559 = vld [vmem:[%s5 + $0xe8] sm:$0xff]
  %v560 = vld [vmem:[%s5 + $0xf0] sm:$0xff]
  %v561 = vld [vmem:[%s5 + $0xf8] sm:$0xff]
  %v562 = vld [vmem:[%s6] sm:$0x1]
  %v564 = vperm.slane %v562, 0
  %566 = vmatpush.msra.mxu0 %v545
  %567 = vmatpush.msra.mxu0 %v544
  %568 = vmatpush.msra.mxu0 %v543
  %569 = vmatpush.msra.mxu0 %v542
  %570 = vmatpush.msra.mxu0 %v541
  %571 = vmatpush.msra.mxu0 %v540
  %572 = vmatpush.msra.mxu0 %v539
  %573 = vmatpush.msra.mxu0 %v538
  %574 = vmatpush.msra.mxu0 %v537
  %575 = vmatpush.msra.mxu0 %v536
  %576 = vmatpush.msra.mxu0 %v535
  %577 = vmatpush.msra.mxu0 %v534
  %578 = vmatpush.msra.mxu0 %v533
  %579 = vmatpush.msra.mxu0 %v532
  %580 = vmatpush.msra.mxu0 %v531
  %581 = vmatpush.msra.mxu0 %v530
  %582 = vmatmul.f32.gmra.mxu0 %v528
  %v583 = vpop.f32.mrf.mxu0
  %v584 = vadd.f32 %v564, %v583
  %585 = vdwg.mxu0
  %586 = vmatpush.msra.mxu0 %v561
  %587 = vmatpush.msra.mxu0 %v560
  %588 = vmatpush.msra.mxu0 %v559
  %589 = vmatpush.msra.mxu0 %v558
  %590 = vmatpush.msra.mxu0 %v557
  %591 = vmatpush.msra.mxu0 %v556
  %592 = vmatpush.msra.mxu0 %v555
  %593 = vmatpush.msra.mxu0 %v554
  %594 = vmatpush.msra.mxu0 %v553
  %595 = vmatpush.msra.mxu0 %v552
  %596 = vmatpush.msra.mxu0 %v551
  %597 = vmatpush.msra.mxu0 %v550
  %598 = vmatpush.msra.mxu0 %v549
  %599 = vmatpush.msra.mxu0 %v548
  %600 = vmatpush.msra.mxu0 %v547
  %601 = vmatpush.msra.mxu0 %v546
  %602 = vmatmul.f32.gmra.mxu0 %v529
  %v603 = vpop.f32.mrf.mxu0
  %v604 = vadd.f32 %v584, %v603
  %605 = vdwg.mxu0
  %606 = vst [vmem:[%s7] sm:$0x3f] %v604
  // Predicated region
  $region30: #{triple_net_forward.3} parent=0 // pred_check
    _
  $region31: #{triple_net_forward.3} parent=0 // pred_check_branch
    %608 = sbr.rel (0) target = $region33
  $region32: #{triple_net_forward.3} parent=0 // pred_region
    _
  $region33: #{triple_net_forward.3} parent=0 // pred_fallthru
    _
  // Predicated region
  $region34: #{triple_net_forward.3} parent=0 // pred_check
    _
  $region35: #{triple_net_forward.3} parent=0 // pred_check_branch
    %610 = sbr.rel (0) target = $region37
  $region36: #{triple_net_forward.3} parent=0 // pred_region
    _
  $region37: #{triple_net_forward.3} parent=0 // pred_fallthru
    _

</llo_original>
